<compile_context>
chip_gen: v7x
topology: tpu7x:2x2x1
jax: 0.10.0
libtpu: 0.0.40
codegen_flags: <defaults>
</compile_context>

<pallas_src>
import math
from functools import partial

import jax
import jax.numpy as jnp
from jax.experimental import pallas as pl
from jax.experimental.pallas import tpu as pltpu


def _round_up(x, m):
    return (x + m - 1) // m * m


def _cdiv(a, b):
    return (a + b - 1) // b


def _pad2(a, rows, cols):
    r, c = a.shape
    return jnp.pad(a.astype(jnp.float32), ((0, rows - r), (0, cols - c)))


def pack_policy_params(w1, b1, w2, b2, w3, b3):
    """Coalesce all weights/biases into one lane-padded (R, 128k) f32 slab.

    Weights are (in, out) (transposed vs. torch Linear.weight), biases are (out,).
    Row layout (all sub-blocks start on 8-row boundaries):
      [0, s_p)              W1 padded to (s_p, F)
      [s_p, s_p+8)          b1 in row 0
      next F rows           W2 padded to (F, F)
      next 8 rows           b2 in row 0
      next F rows           W3 padded to (F, F)
      next 8 rows           b3 in row 0
    Zero padding keeps all padded hidden lanes exactly 0 through the MLP.
    The head-bias row b3 has its padded lanes (action_size..F) set to -1e30:
    padded W3 columns are zero, so the padded logit lanes equal exactly -1e30
    and underflow to probability 0 in the softmax with no in-kernel masking.
    """
    state_size, hidden = w1.shape
    action_size = w3.shape[1]
    feat = _round_up(max(hidden, action_size), 128)   # lane-padded feature width
    s_p = _round_up(state_size, 8)

    b3_row = jnp.full((1, feat), -1e30, dtype=jnp.float32)
    b3_row = b3_row.at[0, :action_size].set(b3.astype(jnp.float32))
    b3_block = jnp.pad(b3_row, ((0, 7), (0, 0)))      # only row 0 is ever read

    slab = jnp.concatenate(
        [
            _pad2(w1, s_p, feat),
            _pad2(b1.reshape(1, -1), 8, feat),
            _pad2(w2, feat, feat),
            _pad2(b2.reshape(1, -1), 8, feat),
            _pad2(w3, feat, feat),
            b3_block,
        ],
        axis=0,
    )
    meta = dict(state_size=state_size, hidden=hidden, action_size=action_size,
                s_p=s_p, feat=feat)
    return slab, meta


def _make_policy_kernel(s_p, feat, action_size):
    # Static row offsets into the parameter slab (all 8-row aligned).
    r_w1 = 0
    r_b1 = r_w1 + s_p
    r_w2 = r_b1 + 8
    r_b2 = r_w2 + feat
    r_w3 = r_b2 + 8
    r_b3 = r_w3 + feat

    def kernel(x_ref, p_ref, out_ref):
        x = x_ref[...]                                        # (Bt, s_p)

        # dense1 + relu
        w1 = p_ref[r_w1:r_w1 + s_p, :]                        # (s_p, F)
        b1 = p_ref[r_b1:r_b1 + 1, :]                          # (1, F)
        h = jnp.dot(x, w1, preferred_element_type=jnp.float32)
        h = jnp.maximum(h + b1, 0.0)

        # dense2 + relu
        w2 = p_ref[r_w2:r_w2 + feat, :]                       # (F, F)
        b2 = p_ref[r_b2:r_b2 + 1, :]
        h = jnp.dot(h, w2, preferred_element_type=jnp.float32)
        h = jnp.maximum(h + b2, 0.0)

        # head + softmax over the action axis (dim=1).
        # Padded logit lanes are exactly -1e30 (baked into b3 at pack time) and
        # underflow to 0 in exp; no in-kernel masking needed.
        w3 = p_ref[r_w3:r_w3 + feat, :]                       # (F, F)
        b3 = p_ref[r_b3:r_b3 + 1, :]
        logits = jnp.dot(h, w3, preferred_element_type=jnp.float32) + b3

        m = jnp.max(logits, axis=1, keepdims=True)
        e = jnp.exp(logits - m)
        denom = jnp.sum(e, axis=1, keepdims=True)
        # Exact reciprocal keeps row sums at 1 within 1e-5.
        probs = e * pl.reciprocal(denom, approx=False)

        # Narrow store: only the real action lanes go back to HBM
        # (16x fewer output write bytes than a lane-padded (Bt, 128) slab).
        out_ref[...] = probs[:, :action_size]

    return kernel


@partial(jax.jit,
         static_argnames=("state_size", "hidden", "action_size", "s_p", "feat",
                          "block_b"))
def _policy_forward_impl(state, params_slab, *, state_size, hidden, action_size,
                         s_p, feat, block_b):
    batch = state.shape[0]
    total_rows = params_slab.shape[0]

    state = state.astype(jnp.float32)
    if state_size != s_p:
        state = jnp.pad(state, ((0, 0), (0, s_p - state_size)))

    # Batch tiling:
    #  * cap the tile so the grid has >= 2 steps whenever batch > 8, so both
    #    v7x TensorCores get work under dimension_semantics=("parallel",)
    #    (neutral on single-TC v5e/v6e);
    #  * then split the batch evenly so per-step padding is <= 7 rows.
    if batch > 8:
        bb = min(block_b, max(8, _round_up(_cdiv(batch, 2), 8)))
    else:
        bb = 8
    n_steps = max(1, _cdiv(batch, bb))
    bb = _round_up(_cdiv(batch, n_steps), 8)
    b_pad = n_steps * bb
    if b_pad != batch:
        state = jnp.pad(state, ((0, b_pad - batch), (0, 0)))

    kernel = _make_policy_kernel(s_p, feat, action_size)

    cost = pl.CostEstimate(
        flops=2 * b_pad * (s_p * feat + 2 * feat * feat),
        transcendentals=b_pad * feat,
        bytes_accessed=4 * (b_pad * s_p + total_rows * feat + b_pad * action_size),
    )

    out = pl.pallas_call(
        kernel,
        out_shape=jax.ShapeDtypeStruct((b_pad, action_size), jnp.float32),
        grid_spec=pltpu.PrefetchScalarGridSpec(
            num_scalar_prefetch=0,
            grid=(n_steps,),
            in_specs=[
                # state tiles advance with the batch grid axis
                pl.BlockSpec((bb, s_p), lambda i: (i, 0)),
                # single coalesced parameter slab, VMEM-resident across steps
                pl.BlockSpec((total_rows, feat), lambda i: (0, 0)),
            ],
            out_specs=pl.BlockSpec((bb, action_size), lambda i: (i, 0)),
        ),
        compiler_params=pltpu.CompilerParams(
            dimension_semantics=("parallel",)),
        cost_estimate=cost,
    )(state, params_slab)

    return out[:batch]


def policy_forward(state, params_slab, meta, *, block_b=2048):
    """state: (batch, state_size); params_slab/meta from pack_policy_params."""
    return _policy_forward_impl(state, params_slab, block_b=block_b, **meta)


def _xavier_uniform(key, fan_in, fan_out):
    # Matches torch.nn.init.xavier_uniform_ on a (out, in) weight, then transposed
    # to (in, out) for the kernel. Gain = 1.
    limit = math.sqrt(6.0 / (fan_in + fan_out))
    return jax.random.uniform(key, (fan_in, fan_out), jnp.float32, -limit, limit)


if __name__ == "__main__":
    # Small shapes implied by the module: state_size=16, hidden=32, action_size=8, batch=8.
    batch, state_size, hidden_size, action_size = 8, 16, 32, 8

    key = jax.random.PRNGKey(0)
    k_state, k1, k2, k3 = jax.random.split(key, 4)

    state = jax.random.normal(k_state, (batch, state_size), jnp.float32)

    # Deterministic parameter init (xavier_uniform weights, zero biases).
    w1 = _xavier_uniform(k1, state_size, hidden_size)
    b1 = jnp.zeros((hidden_size,), jnp.float32)
    w2 = _xavier_uniform(k2, hidden_size, hidden_size)
    b2 = jnp.zeros((hidden_size,), jnp.float32)
    w3 = _xavier_uniform(k3, hidden_size, action_size)
    b3 = jnp.zeros((action_size,), jnp.float32)

    # Pack once; keep the slab device-resident across rollout steps.
    params_slab, meta = pack_policy_params(w1, b1, w2, b2, w3, b3)

    probs = policy_forward(state, params_slab, meta)
    probs = jax.block_until_ready(probs)

    # Pure-JAX reference check.
    def ref(x):
        h = jax.nn.relu(x @ w1 + b1)
        h = jax.nn.relu(h @ w2 + b2)
        return jax.nn.softmax(h @ w3 + b3, axis=1)

    expected = ref(state)
    assert probs.shape == (batch, action_size)
    assert jnp.allclose(probs, expected, atol=1e-5, rtol=1e-5)
    assert jnp.allclose(jnp.sum(probs, axis=1), 1.0, atol=1e-5)

    print("KERNEL_OK")
</pallas_src>

<mosaic_0001>
module attributes {stable_mosaic.version = 11 : i64} {
  func.func @kernel(%arg0: i32, %arg1: memref<8x16xf32, #tpu.memory_space<vmem>>, %arg2: memref<296x128xf32, #tpu.memory_space<vmem>>, %arg3: memref<8x8xf32, #tpu.memory_space<vmem>>) attributes {dimension_semantics = [#tpu.dimension_semantics<parallel>], iteration_bounds = array<i64: 1>, scalar_prefetch = 0 : i64, scratch_operands = 0 : i64, tpu.core_type = #tpu.core_type<tc>, window_params = [{transform_indices = @transform_0, window_bounds = array<i64: 8, 16>}, {pipeline_mode = #tpu.pipeline_mode<synchronous>, transform_indices = @transform_1, window_bounds = array<i64: 296, 128>}, {transform_indices = @transform_2, window_bounds = array<i64: 8, 8>}]} {
    %c0 = arith.constant 0 : index
    %c0_0 = arith.constant 0 : index
    %0 = vector.load %arg1[%c0, %c0_0] : memref<8x16xf32, #tpu.memory_space<vmem>>, vector<8x16xf32>
    %c0_1 = arith.constant 0 : index
    %c0_2 = arith.constant 0 : index
    %1 = vector.load %arg2[%c0_1, %c0_2] : memref<296x128xf32, #tpu.memory_space<vmem>>, vector<16x128xf32>
    %c16 = arith.constant 16 : index
    %c0_3 = arith.constant 0 : index
    %2 = vector.load %arg2[%c16, %c0_3] : memref<296x128xf32, #tpu.memory_space<vmem>>, vector<1x128xf32>
    %cst = arith.constant dense<0.000000e+00> : vector<8x128xf32>
    %3 = tpu.matmul %0, %1, %cst {dimension_numbers = #tpu.dot_dimension_numbers<[1], [0], [0], [1], [0, 0, 1, 1], [], []>} : vector<8x16xf32>, vector<16x128xf32>, vector<8x128xf32> -> vector<8x128xf32>
    %4 = vector.broadcast %2 : vector<1x128xf32> to vector<8x128xf32>
    %5 = arith.addf %3, %4 : vector<8x128xf32>
    %cst_4 = arith.constant 0.000000e+00 : f32
    %6 = vector.broadcast %cst_4 : f32 to vector<8x128xf32>
    %7 = arith.maximumf %5, %6 : vector<8x128xf32>
    %c24 = arith.constant 24 : index
    %c0_5 = arith.constant 0 : index
    %8 = vector.load %arg2[%c24, %c0_5] : memref<296x128xf32, #tpu.memory_space<vmem>>, vector<128x128xf32>
    %c152 = arith.constant 152 : index
    %c0_6 = arith.constant 0 : index
    %9 = vector.load %arg2[%c152, %c0_6] : memref<296x128xf32, #tpu.memory_space<vmem>>, vector<1x128xf32>
    %cst_7 = arith.constant dense<0.000000e+00> : vector<8x128xf32>
    %10 = tpu.matmul %7, %8, %cst_7 {dimension_numbers = #tpu.dot_dimension_numbers<[1], [0], [0], [1], [0, 0, 1, 1], [], []>} : vector<8x128xf32>, vector<128x128xf32>, vector<8x128xf32> -> vector<8x128xf32>
    %11 = vector.broadcast %9 : vector<1x128xf32> to vector<8x128xf32>
    %12 = arith.addf %10, %11 : vector<8x128xf32>
    %cst_8 = arith.constant 0.000000e+00 : f32
    %13 = vector.broadcast %cst_8 : f32 to vector<8x128xf32>
    %14 = arith.maximumf %12, %13 : vector<8x128xf32>
    %c160 = arith.constant 160 : index
    %c0_9 = arith.constant 0 : index
    %15 = vector.load %arg2[%c160, %c0_9] : memref<296x128xf32, #tpu.memory_space<vmem>>, vector<128x128xf32>
    %c288 = arith.constant 288 : index
    %c0_10 = arith.constant 0 : index
    %16 = vector.load %arg2[%c288, %c0_10] : memref<296x128xf32, #tpu.memory_space<vmem>>, vector<1x128xf32>
    %cst_11 = arith.constant dense<0.000000e+00> : vector<8x128xf32>
    %17 = tpu.matmul %14, %15, %cst_11 {dimension_numbers = #tpu.dot_dimension_numbers<[1], [0], [0], [1], [0, 0, 1, 1], [], []>} : vector<8x128xf32>, vector<128x128xf32>, vector<8x128xf32> -> vector<8x128xf32>
    %18 = vector.broadcast %16 : vector<1x128xf32> to vector<8x128xf32>
    %19 = arith.addf %17, %18 : vector<8x128xf32>
    %cst_12 = arith.constant dense<0xFF800000> : vector<8xf32>
    %20 = vector.multi_reduction <maximumf>, %19, %cst_12 [1] : vector<8x128xf32> to vector<8xf32>
    %21 = vector.shape_cast %20 : vector<8xf32> to vector<8x1xf32>
    %22 = vector.broadcast %21 : vector<8x1xf32> to vector<8x128xf32>
    %23 = arith.subf %19, %22 : vector<8x128xf32>
    %24 = math.exp %23 : vector<8x128xf32>
    %cst_13 = arith.constant dense<0.000000e+00> : vector<8xf32>
    %25 = vector.multi_reduction <add>, %24, %cst_13 [1] : vector<8x128xf32> to vector<8xf32>
    %26 = vector.shape_cast %25 : vector<8xf32> to vector<8x1xf32>
    %27 = tpu.reciprocal %26 : vector<8x1xf32> -> vector<8x1xf32>
    %28 = vector.broadcast %27 : vector<8x1xf32> to vector<8x128xf32>
    %29 = arith.mulf %24, %28 : vector<8x128xf32>
    %30 = vector.extract_strided_slice %29 {offsets = [0, 0], sizes = [8, 8], strides = [1, 1]} : vector<8x128xf32> to vector<8x8xf32>
    %c0_14 = arith.constant 0 : index
    %c0_15 = arith.constant 0 : index
    %31 = vector.load %arg3[%c0_14, %c0_15] : memref<8x8xf32, #tpu.memory_space<vmem>>, vector<8x8xf32>
    tpu.vector_store %arg3[%c0_14, %c0_15], %30 {strides = array<i32>} : memref<8x8xf32, #tpu.memory_space<vmem>>, vector<8x8xf32>,
    return
  }
  func.func @transform_0(%arg0: i32) -> (i32, i32) {
    %c0_i32 = arith.constant 0 : i32
    %c0_i32_0 = arith.constant 0 : i32
    return %arg0, %c0_i32 : i32, i32
  }
  func.func @transform_1(%arg0: i32) -> (i32, i32) {
    %c0_i32 = arith.constant 0 : i32
    %c0_i32_0 = arith.constant 0 : i32
    %c0_i32_1 = arith.constant 0 : i32
    return %c0_i32, %c0_i32_0 : i32, i32
  }
  func.func @transform_2(%arg0: i32) -> (i32, i32) {
    %c0_i32 = arith.constant 0 : i32
    %c0_i32_0 = arith.constant 0 : i32
    return %arg0, %c0_i32 : i32, i32
  }
}

</mosaic_0001>

<llo_original>
// kernel: _policy_forward_impl.1
$region0: #{_policy_forward_impl.1}
  #allocation0 [shape = 'u32[]', space=smem, size = 0x4, offset = 0x4, fixed_abs, tag = 'smem constant byte address 0x4 - core index']
  #allocation1 [shape = 'u32[144,128]{1,0:T(1,128)}', space=vmem, size = 0x12000, scoped, tag = 'internal scratch']
  %s0 = inlined_call_operand.hbm [shape: f32[8,16], index: 0, kind: input, shape index: {}]
  %s1 = inlined_call_operand.hbm [shape: f32[296,128], index: 1, kind: input, shape index: {}]
  %s2 = inlined_call_operand.hbm [shape: f32[8,8], index: 2, kind: output, shape index: {}]
  %s3 = sld [smem:[#allocation0]]
  $region26: #{_policy_forward_impl.1} parent=0
    _
  %s5 = ssub.s32 1, %s3
  %s6 = scalar_select 0, %s5, %s3
  $region1: #{_policy_forward_impl.1} parent=0
    #allocation2 [shape = 'u8[4096]{0}', space=vmem, size = 0x1000, scoped, tag = 'input window, operand 0, single buffered']
    #allocation3 [shape = 's32[1]{0}', space=sflag, size = 0x4, scoped, tag = 'scoped memory for _policy_forward_impl.1']
    #allocation4 [shape = 's32[1]{0}', space=sflag, size = 0x4, scoped, tag = 'scoped memory for _policy_forward_impl.1']
    #allocation5 [shape = 'u8[151552]{0}', space=vmem, size = 0x25000, scoped, tag = 'input window, operand 1, single buffered']
    #allocation6 [shape = 's32[1]{0}', space=sflag, size = 0x4, scoped, tag = 'scoped memory for _policy_forward_impl.1']
    #allocation7 [shape = 'u8[4096]{0}', space=vmem, size = 0x1000, scoped, tag = 'output window, operand 0, single buffered']
    %7 = vsyncpa [#allocation3], 0
    %8 = vsyncpa [#allocation6], 0
    %9 = vsyncpa [#allocation4], 0
    // Predicated region
    $region2: #{_policy_forward_impl.1} parent=1 // pred_check
      _
    $region3: #{_policy_forward_impl.1} parent=1 // pred_check_branch
      %11 = sbr.rel (0) target = $region5
    $region4: #{_policy_forward_impl.1} parent=1 // pred_region
      %s13 = ssub.s32 128, 128
      %14 = vsyncadd [#allocation3], %s13
      %s16 = sshll.u32 [#allocation2], 4
      %s17 = int_to_ptr.vmem [resolvable:$true] %s16
      %19 = dma.hbm_to_vmem [thread:$0]  %s0, 128, %s17, [#allocation3]
    $region5: #{_policy_forward_impl.1} parent=1 // pred_fallthru
      _
    // Predicated region
    $region6: #{_policy_forward_impl.1} parent=1 // pred_check
      _
    $region7: #{_policy_forward_impl.1} parent=1 // pred_check_branch
      %21 = sbr.rel (0) target = $region9
    $region8: #{_policy_forward_impl.1} parent=1 // pred_region
      %s23 = ssub.s32 4736, 4736
      %24 = vsyncadd [#allocation6], %s23
      %s25 = sshll.u32 [#allocation5], 4
      %s26 = int_to_ptr.vmem [resolvable:$true] %s25
      %31 = dma.hbm_to_vmem [thread:$0]  %s1, 4736, %s26, [#allocation6], 128, 128, 8
    $region9: #{_policy_forward_impl.1} parent=1 // pred_fallthru
      _
    // Predicated region
    $region10: #{_policy_forward_impl.1} parent=1 // pred_check
      _
    $region11: #{_policy_forward_impl.1} parent=1 // pred_check_branch
      %33 = sbr.rel (0) target = $region13
    $region12: #{_policy_forward_impl.1} parent=1 // pred_region
      %34 = dma.done [#allocation3], 128
    $region13: #{_policy_forward_impl.1} parent=1 // pred_fallthru
      _
    // Predicated region
    $region14: #{_policy_forward_impl.1} parent=1 // pred_check
      _
    $region15: #{_policy_forward_impl.1} parent=1 // pred_check_branch
      %36 = sbr.rel (0) target = $region17
    $region16: #{_policy_forward_impl.1} parent=1 // pred_region
      %37 = dma.done [#allocation6], 4736
    $region17: #{_policy_forward_impl.1} parent=1 // pred_fallthru
      _
    %v38 = vld [vmem:[#allocation2] sm:$0xff]
    %v39 = vld [vmem:[#allocation5] sm:$0xff]
    %v40 = vld [vmem:[#allocation5 + $0x8] sm:$0xff]
    %v41 = vld [vmem:[#allocation5 + $0x10] sm:$0x1]
    %v42 = vlaneseq
    %v43 = vshrl.u32 %v42, 7
    %v44 = vsub.s32 0, %v43
    %v45 = vrot.slane %v41, %v44
    %vm46 = vcmask 130048
    %v48 = vsel %vm46, %v38, 0
    %50 = vmatprep.subr.mxu0 0.0
    %51 = vmatpush1.msra.mxu0 %v39
    %52 = vmatprep.subr.mxu0 0.0
    %53 = vmatpush1.msra.mxu0 %v40
    %54 = vmatprep.subr.mxu0 0.0
    %55 = vmatpush1.msra.mxu0 0.0
    %56 = vmatprep.subr.mxu0 0.0
    %57 = vmatpush1.msra.mxu0 0.0
    %58 = vmatprep.subr.mxu0 0.0
    %59 = vmatpush1.msra.mxu0 0.0
    %60 = vmatprep.subr.mxu0 0.0
    %61 = vmatpush1.msra.mxu0 0.0
    %62 = vmatprep.subr.mxu0 0.0
    %63 = vmatpush1.msra.mxu0 0.0
    %64 = vmatprep.subr.mxu0 0.0
    %65 = vmatpush1.msra.mxu0 0.0
    %66 = vmatprep.subr.mxu0 0.0
    %67 = vmatpush1.msra.mxu0 0.0
    %68 = vmatprep.subr.mxu0 0.0
    %69 = vmatpush1.msra.mxu0 0.0
    %70 = vmatprep.subr.mxu0 0.0
    %71 = vmatpush1.msra.mxu0 0.0
    %72 = vmatprep.subr.mxu0 0.0
    %73 = vmatpush1.msra.mxu0 0.0
    %74 = vmatprep.subr.mxu0 0.0
    %75 = vmatpush1.msra.mxu0 0.0
    %76 = vmatprep.subr.mxu0 0.0
    %77 = vmatpush1.msra.mxu0 0.0
    %78 = vmatprep.subr.mxu0 0.0
    %79 = vmatpush1.msra.mxu0 0.0
    %80 = vmatprep.subr.mxu0 0.0
    %81 = vmatpush1.msra.mxu0 0.0
    %82 = vmatprep.subr.mxu0 0.0
    %83 = vmatpush1.msra.mxu0 0.0
    %84 = vmatprep.subr.mxu0 0.0
    %85 = vmatpush1.msra.mxu0 0.0
    %86 = vmatprep.subr.mxu0 0.0
    %87 = vmatpush1.msra.mxu0 0.0
    %88 = vmatprep.subr.mxu0 0.0
    %89 = vmatpush1.msra.mxu0 0.0
    %90 = vmatprep.subr.mxu0 0.0
    %91 = vmatpush1.msra.mxu0 0.0
    %92 = vmatprep.subr.mxu0 0.0
    %93 = vmatpush1.msra.mxu0 0.0
    %94 = vmatprep.subr.mxu0 0.0
    %95 = vmatpush1.msra.mxu0 0.0
    %96 = vmatprep.subr.mxu0 0.0
    %97 = vmatpush1.msra.mxu0 0.0
    %98 = vmatprep.subr.mxu0 0.0
    %99 = vmatpush1.msra.mxu0 0.0
    %100 = vmatprep.subr.mxu0 0.0
    %101 = vmatpush1.msra.mxu0 0.0
    %102 = vmatprep.subr.mxu0 0.0
    %103 = vmatpush1.msra.mxu0 0.0
    %104 = vmatprep.subr.mxu0 0.0
    %105 = vmatpush1.msra.mxu0 0.0
    %106 = vmatprep.subr.mxu0 0.0
    %107 = vmatpush1.msra.mxu0 0.0
    %108 = vmatprep.subr.mxu0 0.0
    %109 = vmatpush1.msra.mxu0 0.0
    %110 = vmatprep.subr.mxu0 0.0
    %111 = vmatpush1.msra.mxu0 0.0
    %112 = vmatprep.subr.mxu0 0.0
    %113 = vmatpush1.msra.mxu0 0.0
    %114 = vmatprep.mubr.f32.mxu0 0.0
    %115 = vmatmul.mubr.f32.gmra.mrb[0].mxu0 %v48
    %v116 = vpop.f32.mrb[0].mxu0
    %v117 = vadd.f32 %v45, %v116
    %v118 = vpop.f32.mrb[0].mxu0
    %119 = vdwg.mxu0
    %v120 = vmax.f32 %v117, 0.0
    %v121 = vld [vmem:[#allocation5 + $0x18] sm:$0xff]
    %v122 = vld [vmem:[#allocation5 + $0x20] sm:$0xff]
    %v123 = vld [vmem:[#allocation5 + $0x28] sm:$0xff]
    %v124 = vld [vmem:[#allocation5 + $0x30] sm:$0xff]
    %v125 = vld [vmem:[#allocation5 + $0x38] sm:$0xff]
    %v126 = vld [vmem:[#allocation5 + $0x40] sm:$0xff]
    %v127 = vld [vmem:[#allocation5 + $0x48] sm:$0xff]
    %v128 = vld [vmem:[#allocation5 + $0x50] sm:$0xff]
    %v129 = vld [vmem:[#allocation5 + $0x58] sm:$0xff]
    %v130 = vld [vmem:[#allocation5 + $0x60] sm:$0xff]
    %v131 = vld [vmem:[#allocation5 + $0x68] sm:$0xff]
    %v132 = vld [vmem:[#allocation5 + $0x70] sm:$0xff]
    %v133 = vld [vmem:[#allocation5 + $0x78] sm:$0xff]
    %v134 = vld [vmem:[#allocation5 + $0x80] sm:$0xff]
    %v135 = vld [vmem:[#allocation5 + $0x88] sm:$0xff]
    %v136 = vld [vmem:[#allocation5 + $0x90] sm:$0xff]
    %v137 = vld [vmem:[#allocation5 + $0x98] sm:$0x1]
    %v138 = vlaneseq
    %v139 = vshrl.u32 %v138, 7
    %v140 = vsub.s32 0, %v139
    %v141 = vrot.slane %v137, %v140
    %142 = vmatprep.subr.mxu0 0.0
    %143 = vmatpush1.msra.mxu0 %v121
    %144 = vmatprep.subr.mxu0 0.0
    %145 = vmatpush1.msra.mxu0 %v122
    %146 = vmatprep.subr.mxu0 0.0
    %147 = vmatpush1.msra.mxu0 %v123
    %148 = vmatprep.subr.mxu0 0.0
    %149 = vmatpush1.msra.mxu0 %v124
    %150 = vmatprep.subr.mxu0 0.0
    %151 = vmatpush1.msra.mxu0 %v125
    %152 = vmatprep.subr.mxu0 0.0
    %153 = vmatpush1.msra.mxu0 %v126
    %154 = vmatprep.subr.mxu0 0.0
    %155 = vmatpush1.msra.mxu0 %v127
    %156 = vmatprep.subr.mxu0 0.0
    %157 = vmatpush1.msra.mxu0 %v128
    %158 = vmatprep.subr.mxu0 0.0
    %159 = vmatpush1.msra.mxu0 %v129
    %160 = vmatprep.subr.mxu0 0.0
    %161 = vmatpush1.msra.mxu0 %v130
    %162 = vmatprep.subr.mxu0 0.0
    %163 = vmatpush1.msra.mxu0 %v131
    %164 = vmatprep.subr.mxu0 0.0
    %165 = vmatpush1.msra.mxu0 %v132
    %166 = vmatprep.subr.mxu0 0.0
    %167 = vmatpush1.msra.mxu0 %v133
    %168 = vmatprep.subr.mxu0 0.0
    %169 = vmatpush1.msra.mxu0 %v134
    %170 = vmatprep.subr.mxu0 0.0
    %171 = vmatpush1.msra.mxu0 %v135
    %172 = vmatprep.subr.mxu0 0.0
    %173 = vmatpush1.msra.mxu0 %v136
    %174 = vmatprep.subr.mxu0 0.0
    %175 = vmatpush1.msra.mxu0 0.0
    %176 = vmatprep.subr.mxu0 0.0
    %177 = vmatpush1.msra.mxu0 0.0
    %178 = vmatprep.subr.mxu0 0.0
    %179 = vmatpush1.msra.mxu0 0.0
    %180 = vmatprep.subr.mxu0 0.0
    %181 = vmatpush1.msra.mxu0 0.0
    %182 = vmatprep.subr.mxu0 0.0
    %183 = vmatpush1.msra.mxu0 0.0
    %184 = vmatprep.subr.mxu0 0.0
    %185 = vmatpush1.msra.mxu0 0.0
    %186 = vmatprep.subr.mxu0 0.0
    %187 = vmatpush1.msra.mxu0 0.0
    %188 = vmatprep.subr.mxu0 0.0
    %189 = vmatpush1.msra.mxu0 0.0
    %190 = vmatprep.subr.mxu0 0.0
    %191 = vmatpush1.msra.mxu0 0.0
    %192 = vmatprep.subr.mxu0 0.0
    %193 = vmatpush1.msra.mxu0 0.0
    %194 = vmatprep.subr.mxu0 0.0
    %195 = vmatpush1.msra.mxu0 0.0
    %196 = vmatprep.subr.mxu0 0.0
    %197 = vmatpush1.msra.mxu0 0.0
    %198 = vmatprep.subr.mxu0 0.0
    %199 = vmatpush1.msra.mxu0 0.0
    %200 = vmatprep.subr.mxu0 0.0
    %201 = vmatpush1.msra.mxu0 0.0
    %202 = vmatprep.subr.mxu0 0.0
    %203 = vmatpush1.msra.mxu0 0.0
    %204 = vmatprep.subr.mxu0 0.0
    %205 = vmatpush1.msra.mxu0 0.0
    %206 = vmatprep.mubr.f32.mxu0 0.0
    %207 = vmatmul.mubr.f32.gmra.mrb[0].mxu0 %v120
    %v208 = vpop.f32.mrb[0].mxu0
    %v209 = vadd.f32 %v141, %v208
    %v210 = vpop.f32.mrb[0].mxu0
    %211 = vdwg.mxu0
    %v212 = vmax.f32 %v209, 0.0
    %v213 = vld [vmem:[#allocation5 + $0xa0] sm:$0xff]
    %v214 = vld [vmem:[#allocation5 + $0xa8] sm:$0xff]
    %v215 = vld [vmem:[#allocation5 + $0xb0] sm:$0xff]
    %v216 = vld [vmem:[#allocation5 + $0xb8] sm:$0xff]
    %v217 = vld [vmem:[#allocation5 + $0xc0] sm:$0xff]
    %v218 = vld [vmem:[#allocation5 + $0xc8] sm:$0xff]
    %v219 = vld [vmem:[#allocation5 + $0xd0] sm:$0xff]
    %v220 = vld [vmem:[#allocation5 + $0xd8] sm:$0xff]
    %v221 = vld [vmem:[#allocation5 + $0xe0] sm:$0xff]
    %v222 = vld [vmem:[#allocation5 + $0xe8] sm:$0xff]
    %v223 = vld [vmem:[#allocation5 + $0xf0] sm:$0xff]
    %v224 = vld [vmem:[#allocation5 + $0xf8] sm:$0xff]
    %v225 = vld [vmem:[#allocation5 + $0x100] sm:$0xff]
    %v226 = vld [vmem:[#allocation5 + $0x108] sm:$0xff]
    %v227 = vld [vmem:[#allocation5 + $0x110] sm:$0xff]
    %v228 = vld [vmem:[#allocation5 + $0x118] sm:$0xff]
    %v229 = vld [vmem:[#allocation5 + $0x120] sm:$0x1]
    %v230 = vlaneseq
    %v231 = vshrl.u32 %v230, 7
    %v232 = vsub.s32 0, %v231
    %v233 = vrot.slane %v229, %v232
    %234 = vmatprep.subr.mxu0 0.0
    %235 = vmatpush1.msra.mxu0 %v213
    %236 = vmatprep.subr.mxu0 0.0
    %237 = vmatpush1.msra.mxu0 %v214
    %238 = vmatprep.subr.mxu0 0.0
    %239 = vmatpush1.msra.mxu0 %v215
    %240 = vmatprep.subr.mxu0 0.0
    %241 = vmatpush1.msra.mxu0 %v216
    %242 = vmatprep.subr.mxu0 0.0
    %243 = vmatpush1.msra.mxu0 %v217
    %244 = vmatprep.subr.mxu0 0.0
    %245 = vmatpush1.msra.mxu0 %v218
    %246 = vmatprep.subr.mxu0 0.0
    %247 = vmatpush1.msra.mxu0 %v219
    %248 = vmatprep.subr.mxu0 0.0
    %249 = vmatpush1.msra.mxu0 %v220
    %250 = vmatprep.subr.mxu0 0.0
    %251 = vmatpush1.msra.mxu0 %v221
    %252 = vmatprep.subr.mxu0 0.0
    %253 = vmatpush1.msra.mxu0 %v222
    %254 = vmatprep.subr.mxu0 0.0
    %255 = vmatpush1.msra.mxu0 %v223
    %256 = vmatprep.subr.mxu0 0.0
    %257 = vmatpush1.msra.mxu0 %v224
    %258 = vmatprep.subr.mxu0 0.0
    %259 = vmatpush1.msra.mxu0 %v225
    %260 = vmatprep.subr.mxu0 0.0
    %261 = vmatpush1.msra.mxu0 %v226
    %262 = vmatprep.subr.mxu0 0.0
    %263 = vmatpush1.msra.mxu0 %v227
    %264 = vmatprep.subr.mxu0 0.0
    %265 = vmatpush1.msra.mxu0 %v228
    %266 = vmatprep.subr.mxu0 0.0
    %267 = vmatpush1.msra.mxu0 0.0
    %268 = vmatprep.subr.mxu0 0.0
    %269 = vmatpush1.msra.mxu0 0.0
    %270 = vmatprep.subr.mxu0 0.0
    %271 = vmatpush1.msra.mxu0 0.0
    %272 = vmatprep.subr.mxu0 0.0
    %273 = vmatpush1.msra.mxu0 0.0
    %274 = vmatprep.subr.mxu0 0.0
    %275 = vmatpush1.msra.mxu0 0.0
    %276 = vmatprep.subr.mxu0 0.0
    %277 = vmatpush1.msra.mxu0 0.0
    %278 = vmatprep.subr.mxu0 0.0
    %279 = vmatpush1.msra.mxu0 0.0
    %280 = vmatprep.subr.mxu0 0.0
    %281 = vmatpush1.msra.mxu0 0.0
    %282 = vmatprep.subr.mxu0 0.0
    %283 = vmatpush1.msra.mxu0 0.0
    %284 = vmatprep.subr.mxu0 0.0
    %285 = vmatpush1.msra.mxu0 0.0
    %286 = vmatprep.subr.mxu0 0.0
    %287 = vmatpush1.msra.mxu0 0.0
    %288 = vmatprep.subr.mxu0 0.0
    %289 = vmatpush1.msra.mxu0 0.0
    %290 = vmatprep.subr.mxu0 0.0
    %291 = vmatpush1.msra.mxu0 0.0
    %292 = vmatprep.subr.mxu0 0.0
    %293 = vmatpush1.msra.mxu0 0.0
    %294 = vmatprep.subr.mxu0 0.0
    %295 = vmatpush1.msra.mxu0 0.0
    %296 = vmatprep.subr.mxu0 0.0
    %297 = vmatpush1.msra.mxu0 0.0
    %298 = vmatprep.mubr.f32.mxu0 0.0
    %299 = vmatmul.mubr.f32.gmra.mrb[0].mxu0 %v212
    %v300 = vpop.f32.mrb[0].mxu0
    %v301 = vadd.f32 %v233, %v300
    %v302 = vpop.f32.mrb[0].mxu0
    %303 = vdwg.mxu0
    %304 = vmax.xlane.f32.xlu0 %v301
    %v305 = vpop.xlane.xlu0 %304
    %v306 = vsub.f32 %v301, %v305
    %v307 = vmul.f32 %v306, 1.442695
    %v308 = vpow.pop %v307
    %309 = vadd.xlane.f32.xlu0 %v308
    %v310 = vpop.xlane.xlu0 %309
    %v311 = vrcp.pop %v310
    %v312 = vmul.f32 %v308, %v311
    %vm313 = vcmask 64512
    %314 = vst.msk [vmem:[#allocation7] sm:$0xff] %vm313, %v312
    // Predicated region
    $region18: #{_policy_forward_impl.1} parent=1 // pred_check
      _
    $region19: #{_policy_forward_impl.1} parent=1 // pred_check_branch
      %316 = sbr.rel (0) target = $region21
    $region20: #{_policy_forward_impl.1} parent=1 // pred_region
      %s318 = ssub.s32 128, 128
      %319 = vsyncadd [#allocation4], %s318
      %s321 = sshll.u32 [#allocation7], 4
      %s322 = int_to_ptr.vmem [resolvable:$true] %s321
      %324 = dma.vmem_to_hbm [thread:$0]  %s322, 128, %s2, [#allocation4]
    $region21: #{_policy_forward_impl.1} parent=1 // pred_fallthru
      _
    // Predicated region
    $region22: #{_policy_forward_impl.1} parent=1 // pred_check
      _
    $region23: #{_policy_forward_impl.1} parent=1 // pred_check_branch
      %326 = sbr.rel (0) target = $region25
    $region24: #{_policy_forward_impl.1} parent=1 // pred_region
      %327 = dma.done [#allocation4], 128
    $region25: #{_policy_forward_impl.1} parent=1 // pred_fallthru
      _
    %328 = vsyncpa [#allocation3], 1
    %329 = vsyncpa [#allocation6], 1
    %330 = vsyncpa [#allocation4], 1

</llo_original>
